<compile_context>
chip_gen: v5e
topology: v5e:2x2
jax: 0.10.0
libtpu: 0.0.40
codegen_flags: <defaults>
</compile_context>

<pallas_src>
import jax
import jax.numpy as jnp
from jax.experimental import pallas as pl
from jax.experimental.pallas import tpu as pltpu

KSIZE = 3
KK = KSIZE * KSIZE                      # 9 kernel taps
NMASK = 8                               # mask_conv2d always emits 8 mask channels
NEIGHBOR_KK = (0, 1, 2, 3, 5, 6, 7, 8)  # module: x_unfold[:, :, [0,1,2,3,5,6,7,8]] * mask
CENTER_KK = 4
NOUT = NMASK + KK                       # 8 mask logits + 8 neighbor tap-sums + 1 center tap-sum
LN_EPS = 1e-6                           # the module's custom LayerNorm uses eps=1e-6


def _round_up(v, m):
    return (v + m - 1) // m * m


# ----------------------------------------------------------------------------
# Host-side prep (JAX): im2col in nn.Unfold order, streamed in bf16.
# TODO(synk): im2col could be moved on-chip (build the 9 taps from a padded x
# tile in VMEM) to cut the dominant HBM stream by ~9x; kept in XLA here.
# ----------------------------------------------------------------------------
def _im2col_nchw(x, k=KSIZE, pad=1):
    """x: (B,C,H,W) -> (B, C*k*k, H*W), column order c*k*k + ki*k + kj (nn.Unfold)."""
    B, C, H, W = x.shape
    xp = jnp.pad(x, ((0, 0), (0, 0), (pad, pad), (pad, pad)))
    taps = [xp[:, :, ki:ki + H, kj:kj + W] for ki in range(k) for kj in range(k)]
    u = jnp.stack(taps, axis=2)                       # (B, C, 9, H, W)
    return u.reshape(B, C * k * k, H * W)


def _prep_cols(x):
    """(B,C,H,W) -> bf16 (B, CKpad, H*W); contraction axis padded to 16 (bf16 packing)."""
    B, C, H, W = x.shape
    ck = C * KK
    ckp = _round_up(ck, 16)
    cols = _im2col_nchw(x).astype(jnp.bfloat16)
    if ckp != ck:
        cols = jnp.pad(cols, ((0, 0), (0, ckp - ck), (0, 0)))
    return cols


def build_combined_weight(mask_conv_weight, in_channels):
    """Combined (NOUTP, CKpad) bf16 weight:
       rows 0..7   : mask_conv2d weights (flattened to unfold order),
       rows 8..15  : indicator rows summing each non-center tap over channels,
       row 16      : indicator row summing the center tap over channels."""
    C = in_channels
    ck = C * KK
    ckp = _round_up(ck, 16)
    noutp = _round_up(NOUT, 8)
    w = jnp.zeros((noutp, ckp), jnp.float32)
    w = w.at[:NMASK, :ck].set(mask_conv_weight.reshape(NMASK, ck).astype(jnp.float32))
    ch = jnp.arange(C) * KK
    for j, kk in enumerate(NEIGHBOR_KK):
        w = w.at[NMASK + j, ch + kk].set(1.0)
    w = w.at[NMASK + len(NEIGHBOR_KK), ch + CENTER_KK].set(1.0)
    return w.astype(jnp.bfloat16)


def make_diff_weight(in_channels, out_channels):
    """Reference only: diff_conv2d_weight.view(in, -1).t() -> (out*9, in), fixed +-1."""
    base = jnp.array([[-1.0, -1.0, -1.0],
                      [-1.0,  1.0, -1.0],
                      [-1.0, -1.0, -1.0]], jnp.float32)
    w4 = jnp.tile(base[None, None, :, :], (in_channels, out_channels, 1, 1))
    return w4.reshape(in_channels, out_channels * KK).T


# ----------------------------------------------------------------------------
# Pallas kernels (fused mask + masked-diff, pixels on lanes)
# ----------------------------------------------------------------------------
def _onehot_from_logits(y):
    """Strict one-hot of the per-pixel argmax over the 8 mask channels (sublane
    axis); first max wins, matching torch.argmax + scatter_."""
    ymax = jnp.max(y, axis=0, keepdims=True)                              # (1, TH)
    idx = jax.lax.broadcasted_iota(jnp.int32, y.shape, 0).astype(jnp.float32)
    first = jnp.min(jnp.where(y >= ymax, idx, jnp.float32(NMASK)),
                    axis=0, keepdims=True)                                # (1, TH)
    return (idx == first).astype(jnp.float32)                             # (8, TH)


def _diff_from_taps(r, onehot):
    """out[p] = sum_c x_center[c,p] - sum_c x_selected_neighbor[c,p].
    Equal to (unfold * mask) @ diff_weight of the module: the diff weight is the
    fixed +1 center / -1 neighbor pattern and is identical for every out channel."""
    neigh = r[NMASK:NMASK + NMASK, :]                   # (8, TH) neighbor tap channel-sums
    center = r[NMASK + NMASK:NMASK + NMASK + 1, :]      # (1, TH) center tap channel-sum
    return center - jnp.sum(onehot * neigh, axis=0, keepdims=True)


def _fused_init_kernel(cols_ref, w_ref, gum_ref, lnw_ref, lnb_ref,
                       out_ref, mask_ref):
    # One bf16 MXU matmul yields the 8 mask-conv logits AND the 9 per-tap channel
    # sums for this (batch, HW-tile) block; pixels live on the lane axis.
    r = jnp.dot(w_ref[...], cols_ref[...],
                preferred_element_type=jnp.float32)      # (NOUTP, TH) f32
    mask_x = r[:NMASK, :]                                # (8, TH)
    # LayerNorm over the 8 mask channels (dim_index=1 in NCHW), eps=1e-6.
    u = jnp.mean(mask_x, axis=0, keepdims=True)
    d = mask_x - u
    s = jnp.mean(d * d, axis=0, keepdims=True)
    xn = d * jax.lax.rsqrt(s + LN_EPS)
    xn = lnw_ref[...] * xn + lnb_ref[...]
    # Straight-through forward of Soft_argmax is the hard one-hot argmax of the
    # gumbel-perturbed logits; softmax / temperature only shape gradients
    # (argmax((xn+g)/t) == argmax(xn+g) for t > 0), so exp/softmax are dropped.
    onehot = _onehot_from_logits(xn + gum_ref[...])
    mask_ref[...] = onehot.astype(mask_ref.dtype)        # cached unfold_mask01_x (lane-dense)
    val = _diff_from_taps(r, onehot)                     # (1, TH)
    out_ref[...] = jnp.broadcast_to(val, out_ref.shape).astype(out_ref.dtype)


def _fused_cached_kernel(cols_ref, w_ref, mask_ref, out_ref):
    r = jnp.dot(w_ref[...], cols_ref[...], preferred_element_type=jnp.float32)
    onehot = mask_ref[...].astype(jnp.float32)
    val = _diff_from_taps(r, onehot)
    out_ref[...] = jnp.broadcast_to(val, out_ref.shape).astype(out_ref.dtype)


# ----------------------------------------------------------------------------
# pallas_call wrapper / forward pass
# ----------------------------------------------------------------------------
def _pick_tile_hw(hw, max_rows=2048):
    """Largest HW tile (multiple of 128, divisor of HW) under a VMEM-friendly cap."""
    if hw <= max_rows:
        return hw
    t = max_rows - max_rows % 128
    while t >= 128:
        if hw % t == 0:
            return t
        t -= 128
    return hw


def _compiler_params(block_bytes):
    kwargs = dict(dimension_semantics=("parallel", "parallel"))  # megacore / v7x 2-TC sharding
    est = 2 * block_bytes                                        # double-buffered pipeline
    if est > 12 * 1024 * 1024:                                   # above default scoped-VMEM comfort
        kwargs["vmem_limit_bytes"] = min(int(2 * est), 110 * 1024 * 1024)
    return pltpu.CompilerParams(**kwargs)


def conv2d_self_adapt_forward(x, mask_conv_weight, ln_w, ln_b, gumbel, t=1.0,
                              init_flag=True, cached_mask=None, tile_hw=None):
    """Forward of Conv2d_selfAdapt (in_channels == out_channels, the only case the
    PyTorch module's matmul type-checks).  Returns (output NCHW f32, mask) where
    mask is the compact cached one-hot (B, 8, H*W) bf16 (== unfold_mask01_x)."""
    del t  # forward value is temperature-invariant (hard argmax); t only affects gradients
    B, C, H, W = x.shape
    HW = H * W
    cols = _prep_cols(x)                                    # (B, CKp, HW) bf16
    w_all = build_combined_weight(mask_conv_weight, C)      # (NOUTP, CKp) bf16
    noutp, ckp = w_all.shape
    th = tile_hw if tile_hw is not None else _pick_tile_hw(HW)
    assert HW % th == 0 and (th % 128 == 0 or th == HW), (HW, th)
    grid = (B, HW // th)

    cols_spec = pl.BlockSpec((None, ckp, th), lambda b, i: (b, 0, i))
    w_spec = pl.BlockSpec((noutp, ckp), lambda b, i: (0, 0))
    m8_spec = pl.BlockSpec((None, NMASK, th), lambda b, i: (b, 0, i))   # gumbel / mask
    out_spec = pl.BlockSpec((None, C, th), lambda b, i: (b, 0, i))
    ln_spec = pl.BlockSpec((NMASK, 1), lambda b, i: (0, 0))

    block_bytes = 2 * ckp * th + 4 * C * th + 6 * NMASK * th + 2 * noutp * ckp
    cparams = _compiler_params(block_bytes)
    matmul_flops = 2 * B * HW * ckp * noutp

    if init_flag:
        gum = gumbel.reshape(B, NMASK, HW).astype(jnp.float32)
        out, mask01 = pl.pallas_call(
            _fused_init_kernel,
            out_shape=(jax.ShapeDtypeStruct((B, C, HW), jnp.float32),
                       jax.ShapeDtypeStruct((B, NMASK, HW), jnp.bfloat16)),
            grid=grid,
            in_specs=[cols_spec, w_spec, m8_spec, ln_spec, ln_spec],
            out_specs=(out_spec, m8_spec),
            compiler_params=cparams,
            cost_estimate=pl.CostEstimate(
                flops=matmul_flops + 40 * B * HW,
                transcendentals=B * HW,
                bytes_accessed=cols.size * 2 + B * HW * (4 * C + 4 * NMASK + 2 * NMASK)),
        )(cols, w_all, gum,
          ln_w.reshape(NMASK, 1).astype(jnp.float32),
          ln_b.reshape(NMASK, 1).astype(jnp.float32))
    else:
        assert cached_mask is not None
        mask01 = cached_mask
        out = pl.pallas_call(
            _fused_cached_kernel,
            out_shape=jax.ShapeDtypeStruct((B, C, HW), jnp.float32),
            grid=grid,
            in_specs=[cols_spec, w_spec, m8_spec],
            out_specs=out_spec,
            compiler_params=cparams,
            cost_estimate=pl.CostEstimate(
                flops=matmul_flops + 16 * B * HW,
                transcendentals=0,
                bytes_accessed=cols.size * 2 + B * HW * (4 * C + 2 * NMASK)),
        )(cols, w_all, mask01)

    return out.reshape(B, C, H, W), mask01


# ----------------------------------------------------------------------------
if __name__ == "__main__":
    key = jax.random.PRNGKey(0)
    # in_channels must equal out_channels for the module's matmul to type-check
    B, C, H, W = 2, 4, 16, 16
    HW = H * W
    theta = 1.0  # TODO(synk): module default theta=0 divides by zero in gumbel_softmax

    kx, kw, kg = jax.random.split(key, 3)
    x = jax.random.normal(kx, (B, C, H, W), jnp.float32)
    mask_conv_weight = jax.random.normal(kw, (NMASK, C, KSIZE, KSIZE), jnp.float32) * 0.1
    ln_w = jnp.ones((1, NMASK, 1, 1), jnp.float32)        # LayerNorm default init
    ln_b = jnp.zeros((1, NMASK, 1, 1), jnp.float32)

    eps = 1e-20
    U = jax.random.uniform(kg, (B, NMASK, H, W), jnp.float32)  # torch.rand equivalent
    gumbel = -jnp.log(-jnp.log(U + eps) + eps)

    # init_flag=True path; tile_hw=128 -> grid (B, 2) to exercise the HW pipeline
    out, mask01 = conv2d_self_adapt_forward(
        x, mask_conv_weight, ln_w, ln_b, gumbel, theta, init_flag=True, tile_hw=128)
    out = jax.block_until_ready(out)

    # init_flag=False path re-using the compact cached mask
    out2, _ = conv2d_self_adapt_forward(
        x, mask_conv_weight, ln_w, ln_b, gumbel, theta,
        init_flag=False, cached_mask=mask01, tile_hw=128)
    out2 = jax.block_until_ready(out2)

    # ------------------ pure-JAX module-faithful reference ------------------
    CK = C * KK
    cols_bf = _prep_cols(x)                               # same bf16 data the kernel streams
    cols_f = cols_bf[:, :CK, :].astype(jnp.float32)       # (B, CK, HW)
    w_all = build_combined_weight(mask_conv_weight, C)
    w_mask = w_all[:NMASK, :CK].astype(jnp.float32)       # bf16-quantized mask-conv weights

    # mask branch: conv (via unfold) + LayerNorm + gumbel hard argmax
    mask_x = jnp.einsum('mk,bkp->bmp', w_mask, cols_f)
    u = mask_x.mean(axis=1, keepdims=True)
    s = ((mask_x - u) ** 2).mean(axis=1, keepdims=True)
    xn = (mask_x - u) / jnp.sqrt(s + LN_EPS)
    xn = ln_w.reshape(1, NMASK, 1) * xn + ln_b.reshape(1, NMASK, 1)
    y = xn + gumbel.reshape(B, NMASK, HW)
    onehot_ref = jax.nn.one_hot(jnp.argmax(y, axis=1), NMASK, axis=1, dtype=jnp.float32)

    mask_k = mask01.astype(jnp.float32)                   # kernel's one-hot (B, 8, HW)
    assert bool(jnp.all(mask_k.sum(axis=1) == 1.0)), "mask is not a strict one-hot"
    agree = jnp.mean(jnp.all(mask_k == onehot_ref, axis=1).astype(jnp.float32))
    assert float(agree) >= 0.99, f"mask one-hot mismatch: agreement={float(agree)}"

    # diff branch (original module formulation) driven by the kernel's mask
    mult = jnp.ones((B, C, KK, HW), jnp.float32)
    mult = mult.at[:, :, jnp.array(NEIGHBOR_KK), :].set(
        jnp.broadcast_to(mask_k[:, None, :, :], (B, C, NMASK, HW)))
    masked = cols_f.reshape(B, C, KK, HW) * mult
    diff_w = make_diff_weight(C, C)                       # (C*9, C), fixed +-1 pattern
    out_ref = jnp.einsum('bkp,ko->bop', masked.reshape(B, CK, HW), diff_w)
    out_ref = out_ref.reshape(B, C, H, W)

    assert out.shape == (B, C, H, W)
    assert jnp.allclose(out, out_ref, atol=1e-3, rtol=1e-3), \
        float(jnp.max(jnp.abs(out - out_ref)))
    assert jnp.allclose(out2, out, atol=1e-5, rtol=1e-5)
    print("KERNEL_OK")
</pallas_src>

<mosaic_0001>
module attributes {stable_mosaic.version = 11 : i64} {
  func.func @_fused_init_kernel(%arg0: i32, %arg1: i32, %arg2: memref<1x48x128xbf16, #tpu.memory_space<vmem>>, %arg3: memref<24x48xbf16, #tpu.memory_space<vmem>>, %arg4: memref<1x8x128xf32, #tpu.memory_space<vmem>>, %arg5: memref<8x1xf32, #tpu.memory_space<vmem>>, %arg6: memref<8x1xf32, #tpu.memory_space<vmem>>, %arg7: memref<1x4x128xf32, #tpu.memory_space<vmem>>, %arg8: memref<1x8x128xbf16, #tpu.memory_space<vmem>>) attributes {dimension_semantics = [#tpu.dimension_semantics<parallel>, #tpu.dimension_semantics<parallel>], iteration_bounds = array<i64: 2, 2>, scalar_prefetch = 0 : i64, scratch_operands = 0 : i64, tpu.core_type = #tpu.core_type<tc>, window_params = [{transform_indices = @transform_0, window_bounds = array<i64: 1, 48, 128>}, {pipeline_mode = #tpu.pipeline_mode<synchronous>, transform_indices = @transform_1, window_bounds = array<i64: 24, 48>}, {transform_indices = @transform_2, window_bounds = array<i64: 1, 8, 128>}, {pipeline_mode = #tpu.pipeline_mode<synchronous>, transform_indices = @transform_3, window_bounds = array<i64: 8, 1>}, {pipeline_mode = #tpu.pipeline_mode<synchronous>, transform_indices = @transform_4, window_bounds = array<i64: 8, 1>}, {transform_indices = @transform_5, window_bounds = array<i64: 1, 4, 128>}, {transform_indices = @transform_6, window_bounds = array<i64: 1, 8, 128>}]} {
    %c0 = arith.constant 0 : index
    %c0_0 = arith.constant 0 : index
    %0 = vector.load %arg3[%c0, %c0_0] : memref<24x48xbf16, #tpu.memory_space<vmem>>, vector<24x48xbf16>
    %c0_1 = arith.constant 0 : index
    %c0_2 = arith.constant 0 : index
    %c0_3 = arith.constant 0 : index
    %1 = vector.load %arg2[%c0_1, %c0_2, %c0_3] : memref<1x48x128xbf16, #tpu.memory_space<vmem>>, vector<1x48x128xbf16>
    %2 = vector.shape_cast %1 : vector<1x48x128xbf16> to vector<48x128xbf16>
    %cst = arith.constant dense<0.000000e+00> : vector<24x128xf32>
    %3 = tpu.matmul %0, %2, %cst {dimension_numbers = #tpu.dot_dimension_numbers<[1], [0], [0], [1], [0, 0, 1, 1], [], []>} : vector<24x48xbf16>, vector<48x128xbf16>, vector<24x128xf32> -> vector<24x128xf32>
    %4 = vector.extract_strided_slice %3 {offsets = [0, 0], sizes = [8, 128], strides = [1, 1]} : vector<24x128xf32> to vector<8x128xf32>
    %cst_4 = arith.constant dense<0.000000e+00> : vector<128xf32>
    %5 = vector.multi_reduction <add>, %4, %cst_4 [0] : vector<8x128xf32> to vector<128xf32>
    %6 = vector.shape_cast %5 : vector<128xf32> to vector<1x128xf32>
    %cst_5 = arith.constant 8.000000e+00 : f32
    %7 = vector.broadcast %cst_5 : f32 to vector<1x128xf32>
    %8 = arith.divf %6, %7 : vector<1x128xf32>
    %9 = vector.broadcast %8 : vector<1x128xf32> to vector<8x128xf32>
    %10 = arith.subf %4, %9 : vector<8x128xf32>
    %11 = arith.mulf %10, %10 : vector<8x128xf32>
    %cst_6 = arith.constant dense<0.000000e+00> : vector<128xf32>
    %12 = vector.multi_reduction <add>, %11, %cst_6 [0] : vector<8x128xf32> to vector<128xf32>
    %13 = vector.shape_cast %12 : vector<128xf32> to vector<1x128xf32>
    %cst_7 = arith.constant 8.000000e+00 : f32
    %14 = vector.broadcast %cst_7 : f32 to vector<1x128xf32>
    %15 = arith.divf %13, %14 : vector<1x128xf32>
    %cst_8 = arith.constant 9.99999997E-7 : f32
    %16 = vector.broadcast %cst_8 : f32 to vector<1x128xf32>
    %17 = arith.addf %15, %16 : vector<1x128xf32>
    %18 = math.rsqrt %17 : vector<1x128xf32>
    %19 = vector.broadcast %18 : vector<1x128xf32> to vector<8x128xf32>
    %20 = arith.mulf %10, %19 : vector<8x128xf32>
    %c0_9 = arith.constant 0 : index
    %c0_10 = arith.constant 0 : index
    %21 = vector.load %arg5[%c0_9, %c0_10] : memref<8x1xf32, #tpu.memory_space<vmem>>, vector<8x1xf32>
    %22 = vector.broadcast %21 : vector<8x1xf32> to vector<8x128xf32>
    %23 = arith.mulf %22, %20 : vector<8x128xf32>
    %c0_11 = arith.constant 0 : index
    %c0_12 = arith.constant 0 : index
    %24 = vector.load %arg6[%c0_11, %c0_12] : memref<8x1xf32, #tpu.memory_space<vmem>>, vector<8x1xf32>
    %25 = vector.broadcast %24 : vector<8x1xf32> to vector<8x128xf32>
    %26 = arith.addf %23, %25 : vector<8x128xf32>
    %c0_13 = arith.constant 0 : index
    %c0_14 = arith.constant 0 : index
    %c0_15 = arith.constant 0 : index
    %27 = vector.load %arg4[%c0_13, %c0_14, %c0_15] : memref<1x8x128xf32, #tpu.memory_space<vmem>>, vector<1x8x128xf32>
    %28 = vector.shape_cast %27 : vector<1x8x128xf32> to vector<8x128xf32>
    %29 = arith.addf %26, %28 : vector<8x128xf32>
    %cst_16 = arith.constant dense<0xFF800000> : vector<128xf32>
    %30 = vector.multi_reduction <maximumf>, %29, %cst_16 [0] : vector<8x128xf32> to vector<128xf32>
    %31 = vector.shape_cast %30 : vector<128xf32> to vector<1x128xf32>
    %32 = tpu.iota {dimensions = array<i32: 0>} : vector<8x128xi32>
    %33 = arith.sitofp %32 : vector<8x128xi32> to vector<8x128xf32>
    %34 = vector.broadcast %31 : vector<1x128xf32> to vector<8x128xf32>
    %35 = arith.cmpf oge, %29, %34 : vector<8x128xf32>
    %cst_17 = arith.constant 8.000000e+00 : f32
    %36 = vector.broadcast %cst_17 : f32 to vector<8x128xf32>
    %37 = arith.select %35, %33, %36 : vector<8x128xi1>, vector<8x128xf32>
    %cst_18 = arith.constant dense<0x7F800000> : vector<128xf32>
    %38 = vector.multi_reduction <minimumf>, %37, %cst_18 [0] : vector<8x128xf32> to vector<128xf32>
    %39 = vector.shape_cast %38 : vector<128xf32> to vector<1x128xf32>
    %40 = vector.broadcast %39 : vector<1x128xf32> to vector<8x128xf32>
    %41 = arith.cmpf oeq, %33, %40 : vector<8x128xf32>
    %42 = arith.extui %41 : vector<8x128xi1> to vector<8x128xi32>
    %43 = arith.sitofp %42 : vector<8x128xi32> to vector<8x128xf32>
    %44 = arith.truncf %43 : vector<8x128xf32> to vector<8x128xbf16>
    %c0_19 = arith.constant 0 : index
    %c0_20 = arith.constant 0 : index
    %c0_21 = arith.constant 0 : index
    %45 = vector.load %arg8[%c0_19, %c0_20, %c0_21] : memref<1x8x128xbf16, #tpu.memory_space<vmem>>, vector<1x8x128xbf16>
    %46 = vector.shape_cast %45 : vector<1x8x128xbf16> to vector<8x128xbf16>
    %47 = vector.shape_cast %44 : vector<8x128xbf16> to vector<1x8x128xbf16>
    tpu.vector_store %arg8[%c0_19, %c0_20, %c0_21], %47 {strides = array<i32>} : memref<1x8x128xbf16, #tpu.memory_space<vmem>>, vector<1x8x128xbf16>,
    %48 = vector.extract_strided_slice %3 {offsets = [8, 0], sizes = [8, 128], strides = [1, 1]} : vector<24x128xf32> to vector<8x128xf32>
    %49 = vector.extract_strided_slice %3 {offsets = [16, 0], sizes = [1, 128], strides = [1, 1]} : vector<24x128xf32> to vector<1x128xf32>
    %50 = arith.mulf %43, %48 : vector<8x128xf32>
    %cst_22 = arith.constant dense<0.000000e+00> : vector<128xf32>
    %51 = vector.multi_reduction <add>, %50, %cst_22 [0] : vector<8x128xf32> to vector<128xf32>
    %52 = vector.shape_cast %51 : vector<128xf32> to vector<1x128xf32>
    %53 = arith.subf %49, %52 : vector<1x128xf32>
    %54 = vector.shape_cast %53 : vector<1x128xf32> to vector<1x128xf32>
    %55 = vector.broadcast %54 : vector<1x128xf32> to vector<4x128xf32>
    %c0_23 = arith.constant 0 : index
    %c0_24 = arith.constant 0 : index
    %c0_25 = arith.constant 0 : index
    %56 = vector.load %arg7[%c0_23, %c0_24, %c0_25] : memref<1x4x128xf32, #tpu.memory_space<vmem>>, vector<1x4x128xf32>
    %57 = vector.shape_cast %56 : vector<1x4x128xf32> to vector<4x128xf32>
    %58 = vector.shape_cast %55 : vector<4x128xf32> to vector<1x4x128xf32>
    tpu.vector_store %arg7[%c0_23, %c0_24, %c0_25], %58 {strides = array<i32>} : memref<1x4x128xf32, #tpu.memory_space<vmem>>, vector<1x4x128xf32>,
    return
  }
  func.func @transform_0(%arg0: i32, %arg1: i32) -> (i32, i32, i32) {
    %c0_i32 = arith.constant 0 : i32
    %c0_i32_0 = arith.constant 0 : i32
    return %arg0, %c0_i32, %arg1 : i32, i32, i32
  }
  func.func @transform_1(%arg0: i32, %arg1: i32) -> (i32, i32) {
    %c0_i32 = arith.constant 0 : i32
    %c0_i32_0 = arith.constant 0 : i32
    %c0_i32_1 = arith.constant 0 : i32
    return %c0_i32, %c0_i32_0 : i32, i32
  }
  func.func @transform_2(%arg0: i32, %arg1: i32) -> (i32, i32, i32) {
    %c0_i32 = arith.constant 0 : i32
    %c0_i32_0 = arith.constant 0 : i32
    return %arg0, %c0_i32, %arg1 : i32, i32, i32
  }
  func.func @transform_3(%arg0: i32, %arg1: i32) -> (i32, i32) {
    %c0_i32 = arith.constant 0 : i32
    %c0_i32_0 = arith.constant 0 : i32
    %c0_i32_1 = arith.constant 0 : i32
    return %c0_i32, %c0_i32_0 : i32, i32
  }
  func.func @transform_4(%arg0: i32, %arg1: i32) -> (i32, i32) {
    %c0_i32 = arith.constant 0 : i32
    %c0_i32_0 = arith.constant 0 : i32
    %c0_i32_1 = arith.constant 0 : i32
    return %c0_i32, %c0_i32_0 : i32, i32
  }
  func.func @transform_5(%arg0: i32, %arg1: i32) -> (i32, i32, i32) {
    %c0_i32 = arith.constant 0 : i32
    %c0_i32_0 = arith.constant 0 : i32
    return %arg0, %c0_i32, %arg1 : i32, i32, i32
  }
  func.func @transform_6(%arg0: i32, %arg1: i32) -> (i32, i32, i32) {
    %c0_i32 = arith.constant 0 : i32
    %c0_i32_0 = arith.constant 0 : i32
    return %arg0, %c0_i32, %arg1 : i32, i32, i32
  }
}

</mosaic_0001>

<llo_original>
// kernel: tpu_custom_call.1
$region0: #{tpu_custom_call.1}
  #allocation0 [shape = 'u32[]', space=smem, size = 0x4, offset = 0x4, fixed_abs, tag = 'smem constant byte address 0x4 - core index']
  #allocation1 [shape = 'u32[72,128]{1,0:T(1,128)}', space=vmem, size = 0x9000, scoped, tag = 'internal scratch']
  %s0 = inlined_call_operand.hbm [shape: bf16[2,48,256], index: 0, kind: input, shape index: {}]
  %s1 = inlined_call_operand.vmem [shape: bf16[24,48], index: 1, kind: input, shape index: {}]
  %s2 = inlined_call_operand.hbm [shape: f32[2,8,256], index: 2, kind: input, shape index: {}]
  %s3 = inlined_call_operand.vmem [shape: f32[8,1], index: 3, kind: input, shape index: {}]
  %s4 = inlined_call_operand.vmem [shape: f32[8,1], index: 4, kind: input, shape index: {}]
  %s5 = inlined_call_operand.hbm [shape: f32[2,4,256], index: 5, kind: output, shape index: {0}]
  %s6 = inlined_call_operand.hbm [shape: bf16[2,8,256], index: 6, kind: output, shape index: {1}]
  %7 = xla_tuple %s5, %s6
  %s8 = sld [smem:[#allocation0]]
  $region69: #{tpu_custom_call.1} parent=0
    _
  %s10 = ssub.s32 1, %s8
  %s11 = scalar_select 0, %s10, %s8
  $region1: #{tpu_custom_call.1} parent=0
    #allocation2 [shape = 'u8[24576]{0}', space=vmem, size = 0x6000, scoped, tag = 'input window, operand 0']
    #allocation3 [shape = 's32[2]{0}', space=sflag, size = 0x8, scoped, tag = 'scoped memory for tpu_custom_call.1']
    #allocation4 [shape = 's32[2]{0}', space=sflag, size = 0x8, scoped, tag = 'scoped memory for tpu_custom_call.1']
    #allocation5 [shape = 'u8[8192]{0}', space=vmem, size = 0x2000, scoped, tag = 'input window, operand 2']
    #allocation6 [shape = 's32[2]{0}', space=sflag, size = 0x8, scoped, tag = 'scoped memory for tpu_custom_call.1']
    #allocation7 [shape = 'u8[4096]{0}', space=vmem, size = 0x1000, scoped, tag = 'output window, operand 0']
    #allocation8 [shape = 'u8[4096]{0}', space=vmem, size = 0x1000, scoped, tag = 'output window, operand 1']
    #allocation9 [shape = 's32[2]{0}', space=sflag, size = 0x8, scoped, tag = 'scoped memory for tpu_custom_call.1']
    %12 = vsyncpa [#allocation3], 0
    %s13 = scalar_lea.sflag [#allocation3], 1
    %14 = vsyncpa %s13, 0
    %15 = vsyncpa [#allocation6], 0
    %s16 = scalar_lea.sflag [#allocation6], 1
    %17 = vsyncpa %s16, 0
    %18 = vsyncpa [#allocation4], 0
    %s19 = scalar_lea.sflag [#allocation4], 1
    %20 = vsyncpa %s19, 0
    %21 = vsyncpa [#allocation9], 0
    %s22 = scalar_lea.sflag [#allocation9], 1
    %23 = vsyncpa %s22, 0
    loop: start=0, step=1, limit=6
    $region2: #{tpu_custom_call.1} parent=1 // loop_pre_header
      _
    $region3: #{tpu_custom_call.1} parent=1 // loop_header
      %s25 = sphi 0, %s29
      %p26 = scmp.ge.s32.totalorder %s25, 6
      %s32 = sphi 0, %s44
      %s33 = sphi 0, %s40
      %s34 = sphi 0, %s32
      %s35 = sphi 0, %s33
      %s36 = sphi 0, %s34
      %s37 = sphi 0, %s35
      %s49 = sphi 0, %s51
      %s52 = sphi 0, %s49
      %s53 = sphi 0, %s52
      %s69 = sphi 0, %s53
      %s73 = sphi 0, %s73
      %s75 = sphi 0, %s73
      %s76 = sphi 0, %s75
      %s90 = sphi 0, %s76
      %s98 = sphi 0, %s100
      %s101 = sphi 0, %s98
      %s102 = sphi 0, %s101
      %s118 = sphi 0, %s102
      %s122 = sphi 0, %s122
      %s124 = sphi 0, %s122
      %s125 = sphi 0, %s124
      %s139 = sphi 0, %s125
      %s143 = sphi 0, %s143
      %s145 = sphi 0, %s143
      %s146 = sphi 0, %s145
      %s160 = sphi 0, %s146
      %s168 = sphi 0, %s170
      %s171 = sphi 0, %s168
      %s172 = sphi 0, %s171
      %s188 = sphi 0, %s172
      %s196 = sphi 0, %s198
      %s199 = sphi 0, %s196
      %s200 = sphi 0, %s199
      %s216 = sphi 0, %s200
    $region4: #{tpu_custom_call.1} parent=1 // loop_header_branch
      %28 = sbr.rel (%p26) target = $region8
    $region5: #{tpu_custom_call.1} parent=1 // loop_body
      %s30 = ssub.s32 %s25, 1
      %s31 = ssub.s32 %s25, 2
      %s38 = sadd.s32 1, %s33
      %p39 = scmp.ge.s32.totalorder %s38, 2
      %s40 = scalar_select %p39, 0, %s38
      %s41 = sadd.s32 1, %s32
      %s42 = scalar_select %p39, %s41, %s32
      %p43 = scmp.ge.s32.totalorder %s42, 2
      %s44 = scalar_select %p43, 0, %s42
      %s45 = ssub.s32 %s32, %s44
      %s46 = ssub.s32 %s33, %s40
      %s47 = sor.u32 %s45, %s46
      %p48 = scmp.eq.s32.totalorder %s47, 0
      %s50 = sadd.s32 %s49, 1
      %s51 = scalar_select %p48, %s49, %s50
      %p54 = pneg %p48
      %p55 = scmp.eq.s32.totalorder %s25, 3
      %p56 = por %p54, %p55
      %p57 = scmp.ne.s32.totalorder %s49, %s52
      %p58 = scmp.eq.s32.totalorder %s25, 0
      %p59 = por %p57, %p58
      %p60 = scmp.ne.s32.totalorder %s49, %s52
      %p61 = scmp.eq.s32.totalorder %s30, 3
      %p62 = por %p60, %p61
      %p63 = scmp.ne.s32.totalorder %s52, %s53
      %p64 = scmp.eq.s32.totalorder %s30, 0
      %p65 = por %p63, %p64
      %p66 = scmp.ne.s32.totalorder %s52, %s53
      %p67 = scmp.eq.s32.totalorder %s31, 3
      %p68 = por %p66, %p67
      %p70 = scmp.ne.s32.totalorder %s53, %s69
      %p71 = scmp.eq.s32.totalorder %s31, 0
      %p72 = por %p70, %p71
      %s74 = sadd.s32 %s73, 1
      %p77 = scmp.eq.s32.totalorder %s25, 3
      %p78 = scmp.ne.s32.totalorder %s73, %s75
      %p79 = scmp.eq.s32.totalorder %s25, 0
      %p80 = por %p78, %p79
      %p81 = scmp.ne.s32.totalorder %s73, %s75
      %p82 = scmp.eq.s32.totalorder %s30, 3
      %p83 = por %p81, %p82
      %p84 = scmp.ne.s32.totalorder %s75, %s76
      %p85 = scmp.eq.s32.totalorder %s30, 0
      %p86 = por %p84, %p85
      %p87 = scmp.ne.s32.totalorder %s75, %s76
      %p88 = scmp.eq.s32.totalorder %s31, 3
      %p89 = por %p87, %p88
      %p91 = scmp.ne.s32.totalorder %s76, %s90
      %p92 = scmp.eq.s32.totalorder %s31, 0
      %p93 = por %p91, %p92
      %s94 = ssub.s32 %s32, %s44
      %s95 = ssub.s32 %s33, %s40
      %s96 = sor.u32 %s94, %s95
      %p97 = scmp.eq.s32.totalorder %s96, 0
      %s99 = sadd.s32 %s98, 1
      %s100 = scalar_select %p97, %s98, %s99
      %p103 = pneg %p97
      %p104 = scmp.eq.s32.totalorder %s25, 3
      %p105 = por %p103, %p104
      %p106 = scmp.ne.s32.totalorder %s98, %s101
      %p107 = scmp.eq.s32.totalorder %s25, 0
      %p108 = por %p106, %p107
      %p109 = scmp.ne.s32.totalorder %s98, %s101
      %p110 = scmp.eq.s32.totalorder %s30, 3
      %p111 = por %p109, %p110
      %p112 = scmp.ne.s32.totalorder %s101, %s102
      %p113 = scmp.eq.s32.totalorder %s30, 0
      %p114 = por %p112, %p113
      %p115 = scmp.ne.s32.totalorder %s101, %s102
      %p116 = scmp.eq.s32.totalorder %s31, 3
      %p117 = por %p115, %p116
      %p119 = scmp.ne.s32.totalorder %s102, %s118
      %p120 = scmp.eq.s32.totalorder %s31, 0
      %p121 = por %p119, %p120
      %s123 = sadd.s32 %s122, 1
      %p126 = scmp.eq.s32.totalorder %s25, 3
      %p127 = scmp.ne.s32.totalorder %s122, %s124
      %p128 = scmp.eq.s32.totalorder %s25, 0
      %p129 = por %p127, %p128
      %p130 = scmp.ne.s32.totalorder %s122, %s124
      %p131 = scmp.eq.s32.totalorder %s30, 3
      %p132 = por %p130, %p131
      %p133 = scmp.ne.s32.totalorder %s124, %s125
      %p134 = scmp.eq.s32.totalorder %s30, 0
      %p135 = por %p133, %p134
      %p136 = scmp.ne.s32.totalorder %s124, %s125
      %p137 = scmp.eq.s32.totalorder %s31, 3
      %p138 = por %p136, %p137
      %p140 = scmp.ne.s32.totalorder %s125, %s139
      %p141 = scmp.eq.s32.totalorder %s31, 0
      %p142 = por %p140, %p141
      %s144 = sadd.s32 %s143, 1
      %p147 = scmp.eq.s32.totalorder %s25, 3
      %p148 = scmp.ne.s32.totalorder %s143, %s145
      %p149 = scmp.eq.s32.totalorder %s25, 0
      %p150 = por %p148, %p149
      %p151 = scmp.ne.s32.totalorder %s143, %s145
      %p152 = scmp.eq.s32.totalorder %s30, 3
      %p153 = por %p151, %p152
      %p154 = scmp.ne.s32.totalorder %s145, %s146
      %p155 = scmp.eq.s32.totalorder %s30, 0
      %p156 = por %p154, %p155
      %p157 = scmp.ne.s32.totalorder %s145, %s146
      %p158 = scmp.eq.s32.totalorder %s31, 3
      %p159 = por %p157, %p158
      %p161 = scmp.ne.s32.totalorder %s146, %s160
      %p162 = scmp.eq.s32.totalorder %s31, 0
      %p163 = por %p161, %p162
      %s164 = ssub.s32 %s32, %s44
      %s165 = ssub.s32 %s33, %s40
      %s166 = sor.u32 %s164, %s165
      %p167 = scmp.eq.s32.totalorder %s166, 0
      %s169 = sadd.s32 %s168, 1
      %s170 = scalar_select %p167, %s168, %s169
      %p173 = pneg %p167
      %p174 = scmp.eq.s32.totalorder %s25, 3
      %p175 = por %p173, %p174
      %p176 = scmp.ne.s32.totalorder %s168, %s171
      %p177 = scmp.eq.s32.totalorder %s25, 0
      %p178 = por %p176, %p177
      %p179 = scmp.ne.s32.totalorder %s168, %s171
      %p180 = scmp.eq.s32.totalorder %s30, 3
      %p181 = por %p179, %p180
      %p182 = scmp.ne.s32.totalorder %s171, %s172
      %p183 = scmp.eq.s32.totalorder %s30, 0
      %p184 = por %p182, %p183
      %p185 = scmp.ne.s32.totalorder %s171, %s172
      %p186 = scmp.eq.s32.totalorder %s31, 3
      %p187 = por %p185, %p186
      %p189 = scmp.ne.s32.totalorder %s172, %s188
      %p190 = scmp.eq.s32.totalorder %s31, 0
      %p191 = por %p189, %p190
      %s192 = ssub.s32 %s32, %s44
      %s193 = ssub.s32 %s33, %s40
      %s194 = sor.u32 %s192, %s193
      %p195 = scmp.eq.s32.totalorder %s194, 0
      %s197 = sadd.s32 %s196, 1
      %s198 = scalar_select %p195, %s196, %s197
      %p201 = pneg %p195
      %p202 = scmp.eq.s32.totalorder %s25, 3
      %p203 = por %p201, %p202
      %p204 = scmp.ne.s32.totalorder %s196, %s199
      %p205 = scmp.eq.s32.totalorder %s25, 0
      %p206 = por %p204, %p205
      %p207 = scmp.ne.s32.totalorder %s196, %s199
      %p208 = scmp.eq.s32.totalorder %s30, 3
      %p209 = por %p207, %p208
      %p210 = scmp.ne.s32.totalorder %s199, %s200
      %p211 = scmp.eq.s32.totalorder %s30, 0
      %p212 = por %p210, %p211
      %p213 = scmp.ne.s32.totalorder %s199, %s200
      %p214 = scmp.eq.s32.totalorder %s31, 3
      %p215 = por %p213, %p214
      %p217 = scmp.ne.s32.totalorder %s200, %s216
      %p218 = scmp.eq.s32.totalorder %s31, 0
      %p219 = por %p217, %p218
      %p220 = scmp.le.s32.totalorder 1, %s25
      %p221 = scmp.lt.s32.totalorder %s25, 5
      %p222 = pnand %p220, %p221
      %p223 = pneg %p222
      // Predicated region
      $region9: #{tpu_custom_call.1} parent=5 // pred_check
        _
      $region10: #{tpu_custom_call.1} parent=5 // pred_check_branch
        %225 = sbr.rel (%p222) target = $region12
      $region11: #{tpu_custom_call.1} parent=5 // pred_region
        %s226 = ssub.s32 %s25, 1
        // Predicated region
        $region13: #{tpu_custom_call.1} parent=11 // pred_check
          %p227 = pneg %p86
        $region14: #{tpu_custom_call.1} parent=11 // pred_check_branch
          %229 = sbr.rel (%p227) target = $region16
        $region15: #{tpu_custom_call.1} parent=11 // pred_region
          _
        $region16: #{tpu_custom_call.1} parent=11 // pred_fallthru
          _
        // Predicated region
        $region17: #{tpu_custom_call.1} parent=11 // pred_check
          %p230 = pneg %p135
        $region18: #{tpu_custom_call.1} parent=11 // pred_check_branch
          %232 = sbr.rel (%p230) target = $region20
        $region19: #{tpu_custom_call.1} parent=11 // pred_region
          _
        $region20: #{tpu_custom_call.1} parent=11 // pred_fallthru
          _
        // Predicated region
        $region21: #{tpu_custom_call.1} parent=11 // pred_check
          %p233 = pneg %p156
        $region22: #{tpu_custom_call.1} parent=11 // pred_check_branch
          %235 = sbr.rel (%p233) target = $region24
        $region23: #{tpu_custom_call.1} parent=11 // pred_region
          _
        $region24: #{tpu_custom_call.1} parent=11 // pred_fallthru
          _
      $region12: #{tpu_custom_call.1} parent=5 // pred_fallthru
        _
      %p236 = scmp.lt.s32.totalorder %s25, 4
      // Predicated region
      $region25: #{tpu_custom_call.1} parent=5 // pred_check
        %p237 = pneg %p236
      $region26: #{tpu_custom_call.1} parent=5 // pred_check_branch
        %239 = sbr.rel (%p237) target = $region28
      $region27: #{tpu_custom_call.1} parent=5 // pred_region
        // Predicated region
        $region29: #{tpu_custom_call.1} parent=27 // pred_check
          %p240 = pneg %p59
        $region30: #{tpu_custom_call.1} parent=27 // pred_check_branch
          %242 = sbr.rel (%p240) target = $region32
        $region31: #{tpu_custom_call.1} parent=27 // pred_region
          %s243 = sand.u32 %s49, 1
          %s244 = scalar_lea.sflag [#allocation3], %s243
          %s245 = sand.u32 %s49, 1
          %s246 = smul.addr %s245, 24
          %s247 = scalar_lea.vmem [#allocation2], %s246
          %249 = vsyncadd %s244, 0
          %s250 = smul.addr %s32, 12
          %s251 = sadd.s32 %s33, %s250
          %s252 = smul.addr %s251, 4
          %s253 = scalar_lea.hbm %s0, %s252
          %s254 = sshll.u32 %s253, 4
          %s255 = int_to_ptr.hbm [resolvable:$true] %s254
          %s256 = sshll.u32 %s247, 4
          %s257 = int_to_ptr.vmem [resolvable:$true] %s256
          %262 = dma.hbm_to_vmem [thread:$0]  %s255, 384, %s257, %s244, 128, 64, 4
        $region32: #{tpu_custom_call.1} parent=27 // pred_fallthru
          _
        // Predicated region
        $region33: #{tpu_custom_call.1} parent=27 // pred_check
          %p263 = pneg %p108
        $region34: #{tpu_custom_call.1} parent=27 // pred_check_branch
          %265 = sbr.rel (%p263) target = $region36
        $region35: #{tpu_custom_call.1} parent=27 // pred_region
          %s266 = sand.u32 %s98, 1
          %s267 = scalar_lea.sflag [#allocation6], %s266
          %s268 = sand.u32 %s98, 1
          %s269 = smul.addr %s268, 8
          %s270 = scalar_lea.vmem [#allocation5], %s269
          %272 = vsyncadd %s267, 0
          %s273 = smul.addr %s32, 2
          %s274 = sadd.s32 %s33, %s273
          %s275 = smul.addr %s274, 8
          %s276 = scalar_lea.hbm %s2, %s275
          %s278 = sshll.u32 %s276, 4
          %s279 = int_to_ptr.hbm [resolvable:$true] %s278
          %s280 = sshll.u32 %s270, 4
          %s281 = int_to_ptr.vmem [resolvable:$true] %s280
          %283 = dma.hbm_to_vmem [thread:$0]  %s279, 128, %s281, %s267
        $region36: #{tpu_custom_call.1} parent=27 // pred_fallthru
          _
      $region28: #{tpu_custom_call.1} parent=5 // pred_fallthru
        _
      %p284 = scmp.le.s32.totalorder 1, %s25
      %p285 = scmp.lt.s32.totalorder %s25, 5
      %p286 = pnand %p284, %p285
      %p287 = pneg %p286
      // Predicated region
      $region37: #{tpu_custom_call.1} parent=5 // pred_check
        _
      $region38: #{tpu_custom_call.1} parent=5 // pred_check_branch
        %289 = sbr.rel (%p286) target = $region40
      $region39: #{tpu_custom_call.1} parent=5 // pred_region
        %s290 = ssub.s32 %s25, 1
        %s291 = sand.u32 %s52, 1
        %s292 = scalar_lea.sflag [#allocation3], %s291
        %s293 = sand.u32 %s52, 1
        %s294 = smul.addr %s293, 24
        %s295 = scalar_lea.vmem [#allocation2], %s294
        // Predicated region
        $region41: #{tpu_custom_call.1} parent=39 // pred_check
          %p296 = pneg %p65
        $region42: #{tpu_custom_call.1} parent=39 // pred_check_branch
          %298 = sbr.rel (%p296) target = $region44
        $region43: #{tpu_custom_call.1} parent=39 // pred_region
          %300 = dma.done %s292, 384
        $region44: #{tpu_custom_call.1} parent=39 // pred_fallthru
          _
        %s301 = sand.u32 %s101, 1
        %s302 = scalar_lea.sflag [#allocation6], %s301
        %s303 = sand.u32 %s101, 1
        %s304 = smul.addr %s303, 8
        %s305 = scalar_lea.vmem [#allocation5], %s304
        // Predicated region
        $region45: #{tpu_custom_call.1} parent=39 // pred_check
          %p306 = pneg %p114
        $region46: #{tpu_custom_call.1} parent=39 // pred_check_branch
          %308 = sbr.rel (%p306) target = $region48
        $region47: #{tpu_custom_call.1} parent=39 // pred_region
          %310 = dma.done %s302, 128
        $region48: #{tpu_custom_call.1} parent=39 // pred_fallthru
          _
        %s311 = sand.u32 %s52, 1
        %s312 = scalar_lea.sflag [#allocation3], %s311
        %s313 = sand.u32 %s52, 1
        %s314 = smul.addr %s313, 24
        %s315 = scalar_lea.vmem [#allocation2], %s314
        %p316 = pneg %p65
        %p317 = pneg %p62
        %p318 = pneg %p86
        %p319 = pneg %p83
        %s320 = sand.u32 %s101, 1
        %s321 = scalar_lea.sflag [#allocation6], %s320
        %s322 = sand.u32 %s101, 1
        %s323 = smul.addr %s322, 8
        %s324 = scalar_lea.vmem [#allocation5], %s323
        %p325 = pneg %p114
        %p326 = pneg %p111
        %p327 = pneg %p135
        %p328 = pneg %p132
        %p329 = pneg %p156
        %p330 = pneg %p153
        %p331 = pneg %p184
        %p332 = pneg %p181
        %s333 = sand.u32 %s171, 1
        %s334 = scalar_lea.sflag [#allocation4], %s333
        %s335 = sand.u32 %s171, 1
        %s336 = smul.addr %s335, 4
        %s337 = scalar_lea.vmem [#allocation7], %s336
        %p338 = pneg %p212
        %p339 = pneg %p209
        %s340 = sand.u32 %s199, 1
        %s341 = scalar_lea.sflag [#allocation9], %s340
        %s342 = sand.u32 %s199, 1
        %s343 = smul.addr %s342, 4
        %s344 = scalar_lea.vmem [#allocation8], %s343
        %v346 = vld [vmem:[%s1] sm:$0xf]
        %v347 = vld [vmem:[%s1 + $0x4] sm:$0xf]
        %v348 = vld [vmem:[%s1 + $0x8] sm:$0xf]
        %v349 = vld [vmem:[%s295] sm:$0xf]
        %v350 = vld [vmem:[%s295 + $0x4] sm:$0xf]
        %v351 = vld [vmem:[%s295 + $0x8] sm:$0xf]
        %v352 = vld [vmem:[%s295 + $0xc] sm:$0xf]
        %v353 = vld [vmem:[%s295 + $0x10] sm:$0xf]
        %v354 = vld [vmem:[%s295 + $0x14] sm:$0xf]
        %v358 = vunpack.c.l.b16 %v346
        %v359 = vunpack.c.l.b16 %v347
        %v360 = vunpack.c.l.b16 %v348
        %v361 = vpack.c.b16 %v359, %v358
        %v362 = vpack.c.b16 %v360, %v360
        %v369 = vunpack.c.l.b16 %v349
        %v370 = vunpack.c.l.b16 %v350
        %v371 = vunpack.c.l.b16 %v351
        %v372 = vunpack.c.l.b16 %v352
        %v373 = vunpack.c.l.b16 %v353
        %v374 = vunpack.c.l.b16 %v354
        %v375 = vpack.c.b16 %v370, %v369
        %v376 = vpack.c.b16 %v372, %v371
        %v377 = vpack.c.b16 %v374, %v373
        %vm381 = vcmask 392192
        %v383 = vsel %vm381, %v361, 0
        %v386 = vsel %vm381, %v362, 0
        %388 = vmatpush.bf16.msra.mxu0 0
        %389 = vmatpush.bf16.msra.mxu0 0
        %390 = vmatpush.bf16.msra.mxu0 0
        %391 = vmatpush.bf16.msra.mxu0 0
        %392 = vmatpush.bf16.msra.mxu0 0
        %393 = vmatpush.bf16.msra.mxu0 %v377
        %394 = vmatpush.bf16.msra.mxu0 %v376
        %395 = vmatpush.bf16.msra.mxu0 %v375
        %396 = vmatmul.bf16.gmra.mxu0 %v383
        %v397 = vpop.f32.mrf.mxu0
        %v398 = vadd.f32 0.0, %v397
        %v399 = vpop.f32.mrf.mxu0
        %v400 = vadd.f32 0.0, %v399
        %401 = vmatmul.bf16.gmra.mxu0 %v386
        %v402 = vpop.f32.mrf.mxu0
        %v403 = vadd.f32 0.0, %v402
        %v404 = vpop.f32.mrf.mxu0
        %405 = vdwg.mxu0
        %v406 = vrot.slane %v398, 4
        %v407 = vadd.f32 %v398, %v406
        %v408 = vrot.slane %v407, 2
        %v409 = vadd.f32 %v407, %v408
        %v410 = vrot.slane %v409, 1
        %v411 = vadd.f32 %v409, %v410
        %v412 = vrcp.pop 8.0
        %v413 = vmul.f32 8.0, %v412
        %v414 = vsub.f32 1.0, %v413
        %v415 = vmul.f32 %v412, %v414
        %v416 = vadd.f32 %v412, %v415
        %vm417 = vweird.f32 %v412
        %v418 = vsel %vm417, %v412, %v416
        %v419 = vmul.f32 %v411, %v418
        %v420 = vsub.f32 %v398, %v419
        %v421 = vmul.f32 %v420, %v420
        %v422 = vrot.slane %v421, 4
        %v423 = vadd.f32 %v421, %v422
        %v424 = vrot.slane %v423, 2
        %v425 = vadd.f32 %v423, %v424
        %v426 = vrot.slane %v425, 1
        %v427 = vadd.f32 %v425, %v426
        %v428 = vmul.f32 %v427, %v418
        %v429 = vadd.f32 %v428, 1e-06
        %v430 = vrsqrt.pop %v429
        %v431 = vmul.f32 %v430, %v429
        %v432 = vmul.f32 %v431, %v430
        %v433 = vmul.f32 0.5, %v432
        %v434 = vsub.f32 1.5, %v433
        %v435 = vmul.f32 %v430, %v434
        %vm436 = vweird.f32 %v429
        %vm437 = vweird.f32 %v430
        %vm438 = vmor %vm436, %vm437
        %v439 = vsel %vm438, %v430, %v435
        %v440 = vmul.f32 %v420, %v439
        %v441 = vld [vmem:[%s3] sm:$0xff]
        %443 = vset.pattern.permute.xlu0 0
        %444 = vperm.xlu0 %443, %v441
        %v445 = vpop.permute.xlu0 %444
        %v447 = vmul.f32 %v445, %v440
        %v448 = vld [vmem:[%s4] sm:$0xff]
        %450 = vset.pattern.permute.xlu0 0
        %451 = vperm.xlu0 %450, %v448
        %v452 = vpop.permute.xlu0 %451
        %v454 = vadd.f32 %v447, %v452
        %v455 = vld [vmem:[%s305] sm:$0xff]
        %v456 = vadd.f32 %v454, %v455
        %v457 = vrot.slane %v456, 4
        %v458 = vmax.f32 %v456, %v457
        %v459 = vrot.slane %v458, 2
        %v460 = vmax.f32 %v458, %v459
        %v461 = vrot.slane %v460, 1
        %v462 = vmax.f32 %v460, %v461
        %v463 = vlaneseq
        %v464 = vshrl.u32 %v463, 7
        %v465 = vcvt.s32.f32 %v464
        %vm466 = vcmp.ge.f32.partialorder %v456, %v462
        %v467 = vsel %vm466, %v465, 8.0
        %v468 = vrot.slane %v467, 4
        %v469 = vmin.f32 %v467, %v468
        %v470 = vrot.slane %v469, 2
        %v471 = vmin.f32 %v469, %v470
        %v472 = vrot.slane %v471, 1
        %v473 = vmin.f32 %v471, %v472
        %vm474 = vcmp.eq.f32.partialorder %v465, %v473
        %v475 = vsel %vm474, 1, 0
        %v476 = vcvt.s32.f32 %v475
        %v477 = vpack.c.bf16 %v476, %v476
        %478 = vst [vmem:[%s344] sm:$0xf] %v477
        %v479 = vmul.f32 %v476, %v400
        %v480 = vrot.slane %v479, 4
        %v481 = vadd.f32 %v479, %v480
        %v482 = vrot.slane %v481, 2
        %v483 = vadd.f32 %v481, %v482
        %v484 = vrot.slane %v483, 1
        %v485 = vadd.f32 %v483, %v484
        %v486 = vsub.f32 %v403, %v485
        %v487 = vperm.slane %v486, 0
        %488 = vst [vmem:[%s337] sm:$0xf] %v487
        %s489 = sand.u32 %s171, 1
        %s490 = scalar_lea.sflag [#allocation4], %s489
        %s491 = sand.u32 %s171, 1
        %s492 = smul.addr %s491, 4
        %s493 = scalar_lea.vmem [#allocation7], %s492
        %s494 = sand.u32 %s199, 1
        %s495 = scalar_lea.sflag [#allocation9], %s494
        %s496 = sand.u32 %s199, 1
        %s497 = smul.addr %s496, 4
        %s498 = scalar_lea.vmem [#allocation8], %s497
        // Predicated region
        $region49: #{tpu_custom_call.1} parent=39 // pred_check
          %p499 = pneg %p181
        $region50: #{tpu_custom_call.1} parent=39 // pred_check_branch
          %501 = sbr.rel (%p499) target = $region52
        $region51: #{tpu_custom_call.1} parent=39 // pred_region
          %503 = vsyncadd %s490, 0
          %s504 = smul.addr %s34, 2
          %s505 = sadd.s32 %s35, %s504
          %s506 = smul.addr %s505, 4
          %s507 = scalar_lea.hbm %s5, %s506
          %s509 = sshll.u32 %s493, 4
          %s510 = int_to_ptr.vmem [resolvable:$true] %s509
          %s511 = sshll.u32 %s507, 4
          %s512 = int_to_ptr.hbm [resolvable:$true] %s511
          %514 = dma.vmem_to_hbm [thread:$0]  %s510, 64, %s512, %s490
        $region52: #{tpu_custom_call.1} parent=39 // pred_fallthru
          _
        // Predicated region
        $region53: #{tpu_custom_call.1} parent=39 // pred_check
          %p515 = pneg %p209
        $region54: #{tpu_custom_call.1} parent=39 // pred_check_branch
          %517 = sbr.rel (%p515) target = $region56
        $region55: #{tpu_custom_call.1} parent=39 // pred_region
          %519 = vsyncadd %s495, 0
          %s520 = smul.addr %s34, 2
          %s521 = sadd.s32 %s35, %s520
          %s522 = smul.addr %s521, 4
          %s523 = scalar_lea.hbm %s6, %s522
          %s525 = sshll.u32 %s498, 4
          %s526 = int_to_ptr.vmem [resolvable:$true] %s525
          %s527 = sshll.u32 %s523, 4
          %s528 = int_to_ptr.hbm [resolvable:$true] %s527
          %530 = dma.vmem_to_hbm [thread:$0]  %s526, 64, %s528, %s495
        $region56: #{tpu_custom_call.1} parent=39 // pred_fallthru
          _
      $region40: #{tpu_custom_call.1} parent=5 // pred_fallthru
        _
      %p531 = scmp.le.s32.totalorder 2, %s25
      // Predicated region
      $region57: #{tpu_custom_call.1} parent=5 // pred_check
        %p532 = pneg %p531
      $region58: #{tpu_custom_call.1} parent=5 // pred_check_branch
        %534 = sbr.rel (%p532) target = $region60
      $region59: #{tpu_custom_call.1} parent=5 // pred_region
        %s535 = ssub.s32 %s25, 2
        // Predicated region
        $region61: #{tpu_custom_call.1} parent=59 // pred_check
          %p536 = pneg %p187
        $region62: #{tpu_custom_call.1} parent=59 // pred_check_branch
          %538 = sbr.rel (%p536) target = $region64
        $region63: #{tpu_custom_call.1} parent=59 // pred_region
          %s539 = sand.u32 %s172, 1
          %s540 = scalar_lea.sflag [#allocation4], %s539
          %s541 = sand.u32 %s172, 1
          %s542 = smul.addr %s541, 4
          %s543 = scalar_lea.vmem [#allocation7], %s542
          %545 = dma.done %s540, 64
        $region64: #{tpu_custom_call.1} parent=59 // pred_fallthru
          _
        // Predicated region
        $region65: #{tpu_custom_call.1} parent=59 // pred_check
          %p546 = pneg %p215
        $region66: #{tpu_custom_call.1} parent=59 // pred_check_branch
          %548 = sbr.rel (%p546) target = $region68
        $region67: #{tpu_custom_call.1} parent=59 // pred_region
          %s549 = sand.u32 %s200, 1
          %s550 = scalar_lea.sflag [#allocation9], %s549
          %s551 = sand.u32 %s200, 1
          %s552 = smul.addr %s551, 4
          %s553 = scalar_lea.vmem [#allocation8], %s552
          %555 = dma.done %s550, 64
        $region68: #{tpu_custom_call.1} parent=59 // pred_fallthru
          _
      $region60: #{tpu_custom_call.1} parent=5 // pred_fallthru
        _
    $region6: #{tpu_custom_call.1} parent=1 // loop_footer
      %s29 = sadd.s32 1, %s25
    $region7: #{tpu_custom_call.1} parent=1 // loop_footer_branch
      %24 = sbr.rel target = $region3
    $region8: #{tpu_custom_call.1} parent=1 // loop_exit
      _
    %556 = vsyncpa [#allocation3], 1
    %s557 = scalar_lea.sflag [#allocation3], 1
    %558 = vsyncpa %s557, 1
    %559 = vsyncpa [#allocation6], 1
    %s560 = scalar_lea.sflag [#allocation6], 1
    %561 = vsyncpa %s560, 1
    %562 = vsyncpa [#allocation4], 1
    %s563 = scalar_lea.sflag [#allocation4], 1
    %564 = vsyncpa %s563, 1
    %565 = vsyncpa [#allocation9], 1
    %s566 = scalar_lea.sflag [#allocation9], 1
    %567 = vsyncpa %s566, 1

</llo_original>
